<compile_context>
chip_gen: v7x
topology: tpu7x:2x2x1
jax: 0.10.0
libtpu: 0.0.40
codegen_flags: <defaults>
</compile_context>

<pallas_src>
import jax
import jax.numpy as jnp
from jax.experimental import pallas as pl
from jax.experimental.pallas import tpu as pltpu


def _round_up(x, m):
    return ((x + m - 1) // m) * m


def _choose_tile_m(n, batch, cap=512):
    """Largest multiple-of-16 divisor of n (<= cap); fall back to full extent."""
    cands = [t for t in range(16, min(n, cap) + 1, 16) if n % t == 0]
    if not cands:
        return n  # full-extent block dim == array dim is always legal
    tile = max(cands)
    # v7x megacore: for a single image make sure there are >= 2 row tiles so
    # both TensorCores get work.
    if batch == 1 and n // tile < 2:
        smaller = [t for t in cands if n // t >= 2]
        if smaller:
            tile = max(smaller)
    return tile


def _choose_bb(batch, tile_m, num_m, target_rows=512):
    """Images per grid step: amortize per-step overhead for small N while
    keeping at least two total grid points for megacore sharding."""
    best = 1
    for cand in range(1, batch + 1):
        if batch % cand:
            continue
        if cand > 1 and cand * tile_m > target_rows:
            continue
        if num_m * batch >= 2 and num_m * (batch // cand) < 2:
            continue
        best = cand
    return best


def _make_embed_kernel(merge_rows):
    def kernel(p_ref, w_ref, pos_ref, out_ref):
        # p_ref:   (Bb, TILE_M, K)      bf16   patch rows
        # w_ref:   (K, H_pad)           bf16   projection weight (VMEM resident)
        # pos_ref: (1, TILE_M, H_pad)   f32    position embedding + conv bias
        # out_ref: (Bb, TILE_M, H_pad)  out dtype (bf16 by default)
        bb, tm, k = p_ref.shape
        h = w_ref.shape[1]
        if merge_rows:
            # One tall (Bb*TILE_M, K) @ (K, H_pad) MXU matmul.
            proj = jnp.dot(p_ref[...].reshape(bb * tm, k), w_ref[...],
                           preferred_element_type=jnp.float32)
            proj = proj.reshape(bb, tm, h)
            out_ref[...] = (proj + pos_ref[...]).astype(out_ref.dtype)
        else:
            # Fallback when TILE_M is not sublane-pack aligned: one 2-D matmul
            # per image in the block (static unrolled loop).
            for i in range(bb):
                proj = jnp.dot(p_ref[i], w_ref[...],
                               preferred_element_type=jnp.float32)
                out_ref[i] = (proj + pos_ref[0]).astype(out_ref.dtype)
    return kernel


def embeddings_forward(x, conv_w, conv_b, pos_emb, patch_size,
                       out_dtype=jnp.bfloat16):
    """x: (B, C, H, W) NCHW. conv_w: (hidden, C, ph, pw). conv_b: (hidden,).
    pos_emb: (1, N, hidden). Returns (embeddings (B, N, hidden), features=x)."""
    B, C, H, W = x.shape
    ph, pw = patch_size
    nh, nw = H // ph, W // pw
    N = nh * nw
    K = C * ph * pw
    hidden = conv_w.shape[0]
    H_pad = _round_up(hidden, 128)   # lane-dense output / weight width

    TILE_M = _choose_tile_m(N, B)
    num_m = N // TILE_M
    Bb = _choose_bb(B, TILE_M, num_m)
    nb = B // Bb

    # ---- host-side prep: the big stream is materialized exactly once -------
    # Cast to bf16 BEFORE the patchify transpose (half the bytes written),
    # no pad of patches (K is a full-extent block dim; TILE_M divides N).
    xb = x[:, :, :nh * ph, :nw * pw].astype(jnp.bfloat16)
    patches = xb.reshape(B, C, nh, ph, nw, pw)
    patches = patches.transpose(0, 2, 4, 1, 3, 5).reshape(B, N, K)
    # TODO(synk): fuse the patchify into the kernel (x as the pallas_call
    # input with an in-VMEM (C,ph,pw)->K reorder) to remove this HBM round trip.

    # Conv weight (hidden, C, ph, pw) -> (K, hidden) bf16, hidden padded to a
    # multiple of 128 (a no-op for standard hidden sizes).
    w = conv_w.reshape(hidden, K).T.astype(jnp.bfloat16)
    if H_pad != hidden:
        w = jnp.pad(w, ((0, 0), (0, H_pad - hidden)))

    # Fold conv bias into the position embeddings; keep f32 for the epilogue.
    pos_plus_b = (pos_emb.astype(jnp.float32)
                  + conv_b.astype(jnp.float32).reshape(1, 1, hidden))
    if H_pad != hidden:
        pos_plus_b = jnp.pad(pos_plus_b, ((0, 0), (0, 0), (0, H_pad - hidden)))

    merge_rows = (Bb == 1) or (TILE_M % 16 == 0)
    kernel = _make_embed_kernel(merge_rows)

    out = pl.pallas_call(
        kernel,
        out_shape=jax.ShapeDtypeStruct((B, N, H_pad), out_dtype),
        grid_spec=pltpu.PrefetchScalarGridSpec(
            num_scalar_prefetch=0,
            # Batch-group innermost: pos block index is constant across the
            # inner loop (its DMA is elided); the weight is fully resident.
            grid=(num_m, nb),
            in_specs=[
                pl.BlockSpec((Bb, TILE_M, K), lambda m, g: (g, m, 0)),
                pl.BlockSpec((K, H_pad), lambda m, g: (0, 0)),
                pl.BlockSpec((1, TILE_M, H_pad), lambda m, g: (0, m, 0)),
            ],
            out_specs=pl.BlockSpec((Bb, TILE_M, H_pad),
                                   lambda m, g: (g, m, 0)),
        ),
        # Per-step working set is a few MiB (rows per step <= 512), so the
        # default scoped-VMEM limit is safe on all generations; do NOT request
        # the full 64 MiB physical VMEM of a v7x TensorCore.
        compiler_params=pltpu.CompilerParams(
            dimension_semantics=("parallel", "parallel"),
        ),
    )(patches, w, pos_plus_b)

    embeddings = out[:, :, :hidden] if H_pad != hidden else out
    # Dropout: inference semantics -> identity. features = original input x.
    return embeddings, x


def _reference(x, conv_w, conv_b, pos_emb, patch_size):
    # Pure-JAX f32 reference replicating the PyTorch forward (NCHW conv).
    y = jax.lax.conv_general_dilated(
        x, conv_w, window_strides=patch_size, padding="VALID",
        dimension_numbers=("NCHW", "OIHW", "NCHW"))
    y = y + conv_b.reshape(1, -1, 1, 1)
    B, Hc, nh, nw = y.shape
    y = y.reshape(B, Hc, nh * nw).transpose(0, 2, 1)  # flatten(2).transpose(-1,-2)
    return y + pos_emb


if __name__ == "__main__":
    # Small config: batch=2, in_channels=4, img=16x16, patch=4x4, hidden=32
    B, C, IMG, P, HID = 2, 4, 16, 4, 32
    N = (IMG // P) * (IMG // P)

    key = jax.random.PRNGKey(0)
    kx, kw, kb, kp = jax.random.split(key, 4)
    x = jax.random.normal(kx, (B, C, IMG, IMG), dtype=jnp.float32)
    conv_w = 0.02 * jax.random.normal(kw, (HID, C, P, P), dtype=jnp.float32)
    conv_b = 0.01 * jax.random.normal(kb, (HID,), dtype=jnp.float32)
    # Module __init__ uses zeros for pos_emb; use deterministic random values
    # for a non-trivial check (shape matches the Parameter).
    pos_emb = 0.02 * jax.random.normal(kp, (1, N, HID), dtype=jnp.float32)

    emb, feats = embeddings_forward(x, conv_w, conv_b, pos_emb, (P, P))
    jax.block_until_ready(emb)
    jax.block_until_ready(feats)

    ref = _reference(x, conv_w, conv_b, pos_emb, (P, P))
    assert emb.shape == (B, N, HID), emb.shape
    assert feats.shape == x.shape
    # bf16 operands + bf16 output (f32 accumulation) -> loosened tolerance.
    err = float(jnp.max(jnp.abs(emb.astype(jnp.float32) - ref)))
    assert jnp.allclose(emb.astype(jnp.float32), ref, atol=2e-2, rtol=2e-2), err
    assert jnp.array_equal(feats, x)
    print("KERNEL_OK")
</pallas_src>

<mosaic_0001>
module attributes {stable_mosaic.version = 11 : i64} {
  func.func @kernel(%arg0: i32, %arg1: i32, %arg2: memref<1x16x64xbf16, #tpu.memory_space<vmem>>, %arg3: memref<64x128xbf16, #tpu.memory_space<vmem>>, %arg4: memref<1x16x128xf32, #tpu.memory_space<vmem>>, %arg5: memref<1x16x128xbf16, #tpu.memory_space<vmem>>) attributes {dimension_semantics = [#tpu.dimension_semantics<parallel>, #tpu.dimension_semantics<parallel>], iteration_bounds = array<i64: 1, 2>, scalar_prefetch = 0 : i64, scratch_operands = 0 : i64, tpu.core_type = #tpu.core_type<tc>, window_params = [{transform_indices = @transform_0, window_bounds = array<i64: 1, 16, 64>}, {pipeline_mode = #tpu.pipeline_mode<synchronous>, transform_indices = @transform_1, window_bounds = array<i64: 64, 128>}, {transform_indices = @transform_2, window_bounds = array<i64: 1, 16, 128>}, {transform_indices = @transform_3, window_bounds = array<i64: 1, 16, 128>}]} {
    %c0 = arith.constant 0 : index
    %c0_0 = arith.constant 0 : index
    %c0_1 = arith.constant 0 : index
    %0 = vector.load %arg2[%c0, %c0_0, %c0_1] : memref<1x16x64xbf16, #tpu.memory_space<vmem>>, vector<1x16x64xbf16>
    %1 = vector.shape_cast %0 : vector<1x16x64xbf16> to vector<16x64xbf16>
    %c0_2 = arith.constant 0 : index
    %c0_3 = arith.constant 0 : index
    %2 = vector.load %arg3[%c0_2, %c0_3] : memref<64x128xbf16, #tpu.memory_space<vmem>>, vector<64x128xbf16>
    %cst = arith.constant dense<0.000000e+00> : vector<16x128xf32>
    %3 = tpu.matmul %1, %2, %cst {dimension_numbers = #tpu.dot_dimension_numbers<[1], [0], [0], [1], [0, 0, 1, 1], [], []>} : vector<16x64xbf16>, vector<64x128xbf16>, vector<16x128xf32> -> vector<16x128xf32>
    %4 = vector.shape_cast %3 : vector<16x128xf32> to vector<1x16x128xf32>
    %c0_4 = arith.constant 0 : index
    %c0_5 = arith.constant 0 : index
    %c0_6 = arith.constant 0 : index
    %5 = vector.load %arg4[%c0_4, %c0_5, %c0_6] : memref<1x16x128xf32, #tpu.memory_space<vmem>>, vector<1x16x128xf32>
    %6 = arith.addf %4, %5 : vector<1x16x128xf32>
    %7 = arith.truncf %6 : vector<1x16x128xf32> to vector<1x16x128xbf16>
    %c0_7 = arith.constant 0 : index
    %c0_8 = arith.constant 0 : index
    %c0_9 = arith.constant 0 : index
    %8 = vector.load %arg5[%c0_7, %c0_8, %c0_9] : memref<1x16x128xbf16, #tpu.memory_space<vmem>>, vector<1x16x128xbf16>
    tpu.vector_store %arg5[%c0_7, %c0_8, %c0_9], %7 {strides = array<i32>} : memref<1x16x128xbf16, #tpu.memory_space<vmem>>, vector<1x16x128xbf16>,
    return
  }
  func.func @transform_0(%arg0: i32, %arg1: i32) -> (i32, i32, i32) {
    %c0_i32 = arith.constant 0 : i32
    %c0_i32_0 = arith.constant 0 : i32
    return %arg1, %arg0, %c0_i32 : i32, i32, i32
  }
  func.func @transform_1(%arg0: i32, %arg1: i32) -> (i32, i32) {
    %c0_i32 = arith.constant 0 : i32
    %c0_i32_0 = arith.constant 0 : i32
    %c0_i32_1 = arith.constant 0 : i32
    return %c0_i32, %c0_i32_0 : i32, i32
  }
  func.func @transform_2(%arg0: i32, %arg1: i32) -> (i32, i32, i32) {
    %c0_i32 = arith.constant 0 : i32
    %c0_i32_0 = arith.constant 0 : i32
    %c0_i32_1 = arith.constant 0 : i32
    return %c0_i32, %arg0, %c0_i32_0 : i32, i32, i32
  }
  func.func @transform_3(%arg0: i32, %arg1: i32) -> (i32, i32, i32) {
    %c0_i32 = arith.constant 0 : i32
    %c0_i32_0 = arith.constant 0 : i32
    return %arg1, %arg0, %c0_i32 : i32, i32, i32
  }
}

</mosaic_0001>

<llo_original>
// kernel: tpu_custom_call.1
$region0: #{tpu_custom_call.1}
  #allocation0 [shape = 'u32[]', space=smem, size = 0x4, offset = 0x4, fixed_abs, tag = 'smem constant byte address 0x4 - core index']
  #allocation1 [shape = 'u32[144,128]{1,0:T(1,128)}', space=vmem, size = 0x12000, scoped, tag = 'internal scratch']
  %s0 = inlined_call_operand.hbm [shape: bf16[2,16,64], index: 0, kind: input, shape index: {}]
  %s1 = inlined_call_operand.hbm [shape: bf16[64,128], index: 1, kind: input, shape index: {}]
  %s2 = inlined_call_operand.hbm [shape: f32[1,16,128], index: 2, kind: input, shape index: {}]
  %s3 = inlined_call_operand.hbm [shape: bf16[2,16,128], index: 3, kind: output, shape index: {}]
  %s4 = sld [smem:[#allocation0]]
  $region57: #{tpu_custom_call.1} parent=0
    _
  %s6 = ssub.s32 1, %s4
  %s7 = scalar_select 0, %s6, %s4
  $region1: #{tpu_custom_call.1} parent=0
    #allocation2 [shape = 'u8[8192]{0}', space=vmem, size = 0x2000, scoped, tag = 'input window, operand 0']
    #allocation3 [shape = 's32[2]{0}', space=sflag, size = 0x8, scoped, tag = 'scoped memory for tpu_custom_call.1']
    #allocation4 [shape = 's32[2]{0}', space=sflag, size = 0x8, scoped, tag = 'scoped memory for tpu_custom_call.1']
    #allocation5 [shape = 'u8[16384]{0}', space=vmem, size = 0x4000, scoped, tag = 'input window, operand 1, single buffered']
    #allocation6 [shape = 's32[1]{0}', space=sflag, size = 0x4, scoped, tag = 'scoped memory for tpu_custom_call.1']
    #allocation7 [shape = 'u8[8192]{0}', space=vmem, size = 0x2000, scoped, tag = 'input window, operand 2, single buffered']
    #allocation8 [shape = 'u8[8192]{0}', space=vmem, size = 0x2000, scoped, tag = 'output window, operand 0']
    %8 = vsyncpa [#allocation3], 0
    %s9 = scalar_lea.sflag [#allocation3], 1
    %10 = vsyncpa %s9, 0
    %11 = vsyncpa [#allocation6], 0
    %12 = vsyncpa [#allocation4], 0
    %s13 = scalar_lea.sflag [#allocation4], 1
    %14 = vsyncpa %s13, 0
    loop: start=0, step=1, limit=4
    $region2: #{tpu_custom_call.1} parent=1 // loop_pre_header
      _
    $region3: #{tpu_custom_call.1} parent=1 // loop_header
      %s16 = sphi 0, %s20
      %p17 = scmp.ge.s32.totalorder %s16, 4
      %s23 = sphi 0, %s35
      %s24 = sphi 0, %s31
      %s25 = sphi 0, %s23
      %s26 = sphi 0, %s24
      %s27 = sphi 0, %s25
      %s28 = sphi 0, %s26
      %s40 = sphi 0, %s42
      %s43 = sphi 0, %s40
      %s44 = sphi 0, %s43
      %s60 = sphi 0, %s44
      %s64 = sphi 0, %s64
      %s66 = sphi 0, %s64
      %s67 = sphi 0, %s66
      %s81 = sphi 0, %s67
      %s87 = sphi 0, %s89
      %s90 = sphi 0, %s87
      %s91 = sphi 0, %s90
      %s107 = sphi 0, %s91
      %s115 = sphi 0, %s117
      %s118 = sphi 0, %s115
      %s119 = sphi 0, %s118
      %s135 = sphi 0, %s119
    $region4: #{tpu_custom_call.1} parent=1 // loop_header_branch
      %19 = sbr.rel (%p17) target = $region8
    $region5: #{tpu_custom_call.1} parent=1 // loop_body
      %s21 = ssub.s32 %s16, 1
      %s22 = ssub.s32 %s16, 2
      %s29 = sadd.s32 1, %s24
      %p30 = scmp.ge.s32.totalorder %s29, 2
      %s31 = scalar_select %p30, 0, %s29
      %s32 = sadd.s32 1, %s23
      %s33 = scalar_select %p30, %s32, %s23
      %p34 = scmp.ge.s32.totalorder %s33, 1
      %s35 = scalar_select %p34, 0, %s33
      %s36 = ssub.s32 %s24, %s31
      %s37 = ssub.s32 %s23, %s35
      %s38 = sor.u32 %s36, %s37
      %p39 = scmp.eq.s32.totalorder %s38, 0
      %s41 = sadd.s32 %s40, 1
      %s42 = scalar_select %p39, %s40, %s41
      %p45 = pneg %p39
      %p46 = scmp.eq.s32.totalorder %s16, 1
      %p47 = por %p45, %p46
      %p48 = scmp.ne.s32.totalorder %s40, %s43
      %p49 = scmp.eq.s32.totalorder %s16, 0
      %p50 = por %p48, %p49
      %p51 = scmp.ne.s32.totalorder %s40, %s43
      %p52 = scmp.eq.s32.totalorder %s21, 1
      %p53 = por %p51, %p52
      %p54 = scmp.ne.s32.totalorder %s43, %s44
      %p55 = scmp.eq.s32.totalorder %s21, 0
      %p56 = por %p54, %p55
      %p57 = scmp.ne.s32.totalorder %s43, %s44
      %p58 = scmp.eq.s32.totalorder %s22, 1
      %p59 = por %p57, %p58
      %p61 = scmp.ne.s32.totalorder %s44, %s60
      %p62 = scmp.eq.s32.totalorder %s22, 0
      %p63 = por %p61, %p62
      %s65 = sadd.s32 %s64, 1
      %p68 = scmp.eq.s32.totalorder %s16, 1
      %p69 = scmp.ne.s32.totalorder %s64, %s66
      %p70 = scmp.eq.s32.totalorder %s16, 0
      %p71 = por %p69, %p70
      %p72 = scmp.ne.s32.totalorder %s64, %s66
      %p73 = scmp.eq.s32.totalorder %s21, 1
      %p74 = por %p72, %p73
      %p75 = scmp.ne.s32.totalorder %s66, %s67
      %p76 = scmp.eq.s32.totalorder %s21, 0
      %p77 = por %p75, %p76
      %p78 = scmp.ne.s32.totalorder %s66, %s67
      %p79 = scmp.eq.s32.totalorder %s22, 1
      %p80 = por %p78, %p79
      %p82 = scmp.ne.s32.totalorder %s67, %s81
      %p83 = scmp.eq.s32.totalorder %s22, 0
      %p84 = por %p82, %p83
      %s85 = ssub.s32 %s23, %s35
      %p86 = scmp.eq.s32.totalorder %s85, 0
      %s88 = sadd.s32 %s87, 1
      %s89 = scalar_select %p86, %s87, %s88
      %p92 = pneg %p86
      %p93 = scmp.eq.s32.totalorder %s16, 1
      %p94 = por %p92, %p93
      %p95 = scmp.ne.s32.totalorder %s87, %s90
      %p96 = scmp.eq.s32.totalorder %s16, 0
      %p97 = por %p95, %p96
      %p98 = scmp.ne.s32.totalorder %s87, %s90
      %p99 = scmp.eq.s32.totalorder %s21, 1
      %p100 = por %p98, %p99
      %p101 = scmp.ne.s32.totalorder %s90, %s91
      %p102 = scmp.eq.s32.totalorder %s21, 0
      %p103 = por %p101, %p102
      %p104 = scmp.ne.s32.totalorder %s90, %s91
      %p105 = scmp.eq.s32.totalorder %s22, 1
      %p106 = por %p104, %p105
      %p108 = scmp.ne.s32.totalorder %s91, %s107
      %p109 = scmp.eq.s32.totalorder %s22, 0
      %p110 = por %p108, %p109
      %s111 = ssub.s32 %s24, %s31
      %s112 = ssub.s32 %s23, %s35
      %s113 = sor.u32 %s111, %s112
      %p114 = scmp.eq.s32.totalorder %s113, 0
      %s116 = sadd.s32 %s115, 1
      %s117 = scalar_select %p114, %s115, %s116
      %p120 = pneg %p114
      %p121 = scmp.eq.s32.totalorder %s16, 1
      %p122 = por %p120, %p121
      %p123 = scmp.ne.s32.totalorder %s115, %s118
      %p124 = scmp.eq.s32.totalorder %s16, 0
      %p125 = por %p123, %p124
      %p126 = scmp.ne.s32.totalorder %s115, %s118
      %p127 = scmp.eq.s32.totalorder %s21, 1
      %p128 = por %p126, %p127
      %p129 = scmp.ne.s32.totalorder %s118, %s119
      %p130 = scmp.eq.s32.totalorder %s21, 0
      %p131 = por %p129, %p130
      %p132 = scmp.ne.s32.totalorder %s118, %s119
      %p133 = scmp.eq.s32.totalorder %s22, 1
      %p134 = por %p132, %p133
      %p136 = scmp.ne.s32.totalorder %s119, %s135
      %p137 = scmp.eq.s32.totalorder %s22, 0
      %p138 = por %p136, %p137
      %p139 = scmp.le.s32.totalorder 1, %s16
      %p140 = scmp.lt.s32.totalorder %s16, 3
      %p141 = pnand %p139, %p140
      %p142 = pneg %p141
      // Predicated region
      $region9: #{tpu_custom_call.1} parent=5 // pred_check
        _
      $region10: #{tpu_custom_call.1} parent=5 // pred_check_branch
        %144 = sbr.rel (%p141) target = $region12
      $region11: #{tpu_custom_call.1} parent=5 // pred_region
        %s145 = ssub.s32 %s16, 1
        // Predicated region
        $region13: #{tpu_custom_call.1} parent=11 // pred_check
          %p146 = pneg %p77
        $region14: #{tpu_custom_call.1} parent=11 // pred_check_branch
          %148 = sbr.rel (%p146) target = $region16
        $region15: #{tpu_custom_call.1} parent=11 // pred_region
          %s150 = ssub.s32 512, 512
          %151 = vsyncadd [#allocation6], %s150
          %s152 = sshll.u32 [#allocation5], 4
          %s153 = int_to_ptr.vmem [resolvable:$true] %s152
          %158 = dma.hbm_to_vmem [thread:$0]  %s1, 512, %s153, [#allocation6], 64, 64, 4
        $region16: #{tpu_custom_call.1} parent=11 // pred_fallthru
          _
        // Predicated region
        $region17: #{tpu_custom_call.1} parent=11 // pred_check
          %p159 = pneg %p103
        $region18: #{tpu_custom_call.1} parent=11 // pred_check_branch
          %161 = sbr.rel (%p159) target = $region20
        $region19: #{tpu_custom_call.1} parent=11 // pred_region
          %s162 = smul.u32 2, %s25
          %s164 = ssub.s32 256, 256
          %165 = vsyncadd [#allocation6], %s164
          %s166 = smul.addr %s162, 128
          %s167 = scalar_lea.hbm %s2, %s166
          %s168 = sshll.u32 [#allocation7], 4
          %s169 = int_to_ptr.vmem [resolvable:$true] %s168
          %174 = dma.hbm_to_vmem [thread:$0]  %s167, 256, %s169, [#allocation6], 128, 128, 8
        $region20: #{tpu_custom_call.1} parent=11 // pred_fallthru
          _
      $region12: #{tpu_custom_call.1} parent=5 // pred_fallthru
        _
      %p175 = scmp.lt.s32.totalorder %s16, 2
      // Predicated region
      $region21: #{tpu_custom_call.1} parent=5 // pred_check
        %p176 = pneg %p175
      $region22: #{tpu_custom_call.1} parent=5 // pred_check_branch
        %178 = sbr.rel (%p176) target = $region24
      $region23: #{tpu_custom_call.1} parent=5 // pred_region
        // Predicated region
        $region25: #{tpu_custom_call.1} parent=23 // pred_check
          %p179 = pneg %p50
        $region26: #{tpu_custom_call.1} parent=23 // pred_check_branch
          %181 = sbr.rel (%p179) target = $region28
        $region27: #{tpu_custom_call.1} parent=23 // pred_region
          %s182 = sand.u32 %s40, 1
          %s183 = scalar_lea.sflag [#allocation3], %s182
          %s184 = sand.u32 %s40, 1
          %s185 = smul.addr %s184, 8
          %s186 = scalar_lea.vmem [#allocation2], %s185
          %s187 = smul.u32 2, %s23
          %s189 = ssub.s32 128, 128
          %190 = vsyncadd %s183, %s189
          %s191 = smul.addr %s24, 2
          %s192 = sadd.s32 %s187, %s191
          %s193 = smul.addr %s192, 64
          %s194 = scalar_lea.hbm %s0, %s193
          %s195 = sshll.u32 %s186, 4
          %s196 = int_to_ptr.vmem [resolvable:$true] %s195
          %201 = dma.hbm_to_vmem [thread:$0]  %s194, 128, %s196, %s183, 64, 64, 4
        $region28: #{tpu_custom_call.1} parent=23 // pred_fallthru
          _
      $region24: #{tpu_custom_call.1} parent=5 // pred_fallthru
        _
      %p202 = scmp.le.s32.totalorder 1, %s16
      %p203 = scmp.lt.s32.totalorder %s16, 3
      %p204 = pnand %p202, %p203
      %p205 = pneg %p204
      // Predicated region
      $region29: #{tpu_custom_call.1} parent=5 // pred_check
        _
      $region30: #{tpu_custom_call.1} parent=5 // pred_check_branch
        %207 = sbr.rel (%p204) target = $region32
      $region31: #{tpu_custom_call.1} parent=5 // pred_region
        %s208 = ssub.s32 %s16, 1
        %s209 = sand.u32 %s43, 1
        %s210 = scalar_lea.sflag [#allocation3], %s209
        %s211 = sand.u32 %s43, 1
        %s212 = smul.addr %s211, 8
        %s213 = scalar_lea.vmem [#allocation2], %s212
        // Predicated region
        $region33: #{tpu_custom_call.1} parent=31 // pred_check
          %p214 = pneg %p56
        $region34: #{tpu_custom_call.1} parent=31 // pred_check_branch
          %216 = sbr.rel (%p214) target = $region36
        $region35: #{tpu_custom_call.1} parent=31 // pred_region
          %217 = dma.done %s210, 128
        $region36: #{tpu_custom_call.1} parent=31 // pred_fallthru
          _
        // Predicated region
        $region37: #{tpu_custom_call.1} parent=31 // pred_check
          %p218 = pneg %p77
        $region38: #{tpu_custom_call.1} parent=31 // pred_check_branch
          %220 = sbr.rel (%p218) target = $region40
        $region39: #{tpu_custom_call.1} parent=31 // pred_region
          %221 = dma.done [#allocation6], 512
        $region40: #{tpu_custom_call.1} parent=31 // pred_fallthru
          _
        // Predicated region
        $region41: #{tpu_custom_call.1} parent=31 // pred_check
          %p222 = pneg %p103
        $region42: #{tpu_custom_call.1} parent=31 // pred_check_branch
          %224 = sbr.rel (%p222) target = $region44
        $region43: #{tpu_custom_call.1} parent=31 // pred_region
          %225 = dma.done [#allocation6], 256
        $region44: #{tpu_custom_call.1} parent=31 // pred_fallthru
          _
        %s226 = sand.u32 %s43, 1
        %s227 = scalar_lea.sflag [#allocation3], %s226
        %s228 = sand.u32 %s43, 1
        %s229 = smul.addr %s228, 8
        %s230 = scalar_lea.vmem [#allocation2], %s229
        %p231 = pneg %p56
        %p232 = pneg %p53
        %p233 = pneg %p77
        %p234 = pneg %p74
        %p235 = pneg %p103
        %p236 = pneg %p100
        %p237 = pneg %p131
        %p238 = pneg %p128
        %s239 = sand.u32 %s118, 1
        %s240 = scalar_lea.sflag [#allocation4], %s239
        %s241 = sand.u32 %s118, 1
        %s242 = smul.addr %s241, 8
        %s243 = scalar_lea.vmem [#allocation8], %s242
        %s244 = smul.u32 2, %s25
        %s245 = smul.u32 2, %s25
        %s246 = smul.u32 2, %s25
        %v248 = vld [vmem:[%s213] sm:$0xf]
        %v249 = vld [vmem:[%s213 + $0x4] sm:$0xf]
        %v250 = vld [vmem:[#allocation5] sm:$0xf]
        %v251 = vld [vmem:[#allocation5 + $0x4] sm:$0xf]
        %v252 = vld [vmem:[#allocation5 + $0x8] sm:$0xf]
        %v253 = vld [vmem:[#allocation5 + $0xc] sm:$0xf]
        %v254 = vld [vmem:[#allocation5 + $0x10] sm:$0xf]
        %v255 = vld [vmem:[#allocation5 + $0x14] sm:$0xf]
        %v256 = vld [vmem:[#allocation5 + $0x18] sm:$0xf]
        %v257 = vld [vmem:[#allocation5 + $0x1c] sm:$0xf]
        %v260 = vunpack.c.l.b16 %v248
        %v261 = vunpack.c.l.b16 %v249
        %v262 = vpack.c.b16 %v261, %v260
        %v271 = vunpack.c.l.b16 %v250
        %v272 = vunpack.c.l.b16 %v251
        %v273 = vunpack.c.l.b16 %v252
        %v274 = vunpack.c.l.b16 %v253
        %v275 = vunpack.c.l.b16 %v254
        %v276 = vunpack.c.l.b16 %v255
        %v277 = vunpack.c.l.b16 %v256
        %v278 = vunpack.c.l.b16 %v257
        %v279 = vpack.c.b16 %v272, %v271
        %v280 = vpack.c.b16 %v274, %v273
        %v281 = vpack.c.b16 %v276, %v275
        %v282 = vpack.c.b16 %v278, %v277
        %vm287 = vcmask 523264
        %v289 = vsel %vm287, %v262, 0
        %291 = vmatprep.subr.bf16.mxu0 0
        %292 = vmatpush1.bf16.msra.mxu0 %v279
        %293 = vmatprep.subr.bf16.mxu0 0
        %294 = vmatpush1.bf16.msra.mxu0 %v280
        %295 = vmatprep.subr.bf16.mxu0 0
        %296 = vmatpush1.bf16.msra.mxu0 %v281
        %297 = vmatprep.subr.bf16.mxu0 0
        %298 = vmatpush1.bf16.msra.mxu0 %v282
        %299 = vmatprep.subr.bf16.mxu0 0
        %300 = vmatpush1.bf16.msra.mxu0 0
        %301 = vmatprep.subr.bf16.mxu0 0
        %302 = vmatpush1.bf16.msra.mxu0 0
        %303 = vmatprep.subr.bf16.mxu0 0
        %304 = vmatpush1.bf16.msra.mxu0 0
        %305 = vmatprep.subr.bf16.mxu0 0
        %306 = vmatpush1.bf16.msra.mxu0 0
        %307 = vmatprep.subr.bf16.mxu0 0
        %308 = vmatpush1.bf16.msra.mxu0 0
        %309 = vmatprep.subr.bf16.mxu0 0
        %310 = vmatpush1.bf16.msra.mxu0 0
        %311 = vmatprep.subr.bf16.mxu0 0
        %312 = vmatpush1.bf16.msra.mxu0 0
        %313 = vmatprep.subr.bf16.mxu0 0
        %314 = vmatpush1.bf16.msra.mxu0 0
        %315 = vmatprep.subr.bf16.mxu0 0
        %316 = vmatpush1.bf16.msra.mxu0 0
        %317 = vmatprep.subr.bf16.mxu0 0
        %318 = vmatpush1.bf16.msra.mxu0 0
        %319 = vmatprep.subr.bf16.mxu0 0
        %320 = vmatpush1.bf16.msra.mxu0 0
        %321 = vmatprep.subr.bf16.mxu0 0
        %322 = vmatpush1.bf16.msra.mxu0 0
        %323 = vmatprep.mubr.bf16.mxu0 0
        %324 = vmatmul.mubr.bf16.gmra.mrb[0].mxu0 %v289
        %v325 = vpop.f32.mrb[0].mxu0
        %v326 = vadd.f32 0.0, %v325
        %v327 = vpop.f32.mrb[0].mxu0
        %v328 = vpop.f32.mrb[0].mxu0
        %v329 = vadd.f32 0.0, %v328
        %v330 = vpop.f32.mrb[0].mxu0
        %331 = vdwg.mxu0
        %v332 = vld [vmem:[#allocation7] sm:$0xff]
        %v333 = vld [vmem:[#allocation7 + $0x8] sm:$0xff]
        %v334 = vadd.f32 %v326, %v332
        %v335 = vadd.f32 %v329, %v333
        %v336 = vpack.c.bf16 %v335, %v334
        %v338 = vunpack.c.l.b16 %v336
        %v339 = vunpack.c.h.b16 %v336
        %v340 = vpack.c.b16 %v338, %v338
        %v341 = vpack.c.b16 %v339, %v339
        %344 = vst [vmem:[%s243] sm:$0xf] %v340
        %345 = vst [vmem:[%s243 + $0x4] sm:$0xf] %v341
        %s346 = sand.u32 %s118, 1
        %s347 = scalar_lea.sflag [#allocation4], %s346
        %s348 = sand.u32 %s118, 1
        %s349 = smul.addr %s348, 8
        %s350 = scalar_lea.vmem [#allocation8], %s349
        // Predicated region
        $region45: #{tpu_custom_call.1} parent=31 // pred_check
          %p351 = pneg %p128
        $region46: #{tpu_custom_call.1} parent=31 // pred_check_branch
          %353 = sbr.rel (%p351) target = $region48
        $region47: #{tpu_custom_call.1} parent=31 // pred_region
          %s354 = smul.u32 2, %s25
          %s356 = ssub.s32 128, 128
          %357 = vsyncadd %s347, %s356
          %s358 = smul.addr %s26, 2
          %s359 = sadd.s32 %s354, %s358
          %s360 = smul.addr %s359, 64
          %s361 = scalar_lea.hbm %s3, %s360
          %s362 = sshll.u32 %s350, 4
          %s363 = int_to_ptr.vmem [resolvable:$true] %s362
          %368 = dma.vmem_to_hbm [thread:$0]  %s363, 128, %s361, %s347, 64, 64, 4
        $region48: #{tpu_custom_call.1} parent=31 // pred_fallthru
          _
      $region32: #{tpu_custom_call.1} parent=5 // pred_fallthru
        _
      %p369 = scmp.le.s32.totalorder 2, %s16
      // Predicated region
      $region49: #{tpu_custom_call.1} parent=5 // pred_check
        %p370 = pneg %p369
      $region50: #{tpu_custom_call.1} parent=5 // pred_check_branch
        %372 = sbr.rel (%p370) target = $region52
      $region51: #{tpu_custom_call.1} parent=5 // pred_region
        %s373 = ssub.s32 %s16, 2
        // Predicated region
        $region53: #{tpu_custom_call.1} parent=51 // pred_check
          %p374 = pneg %p134
        $region54: #{tpu_custom_call.1} parent=51 // pred_check_branch
          %376 = sbr.rel (%p374) target = $region56
        $region55: #{tpu_custom_call.1} parent=51 // pred_region
          %s377 = sand.u32 %s119, 1
          %s378 = scalar_lea.sflag [#allocation4], %s377
          %s379 = sand.u32 %s119, 1
          %s380 = smul.addr %s379, 8
          %s381 = scalar_lea.vmem [#allocation8], %s380
          %382 = dma.done %s378, 128
        $region56: #{tpu_custom_call.1} parent=51 // pred_fallthru
          _
      $region52: #{tpu_custom_call.1} parent=5 // pred_fallthru
        _
    $region6: #{tpu_custom_call.1} parent=1 // loop_footer
      %s20 = sadd.s32 1, %s16
    $region7: #{tpu_custom_call.1} parent=1 // loop_footer_branch
      %15 = sbr.rel target = $region3
    $region8: #{tpu_custom_call.1} parent=1 // loop_exit
      _
    %383 = vsyncpa [#allocation3], 1
    %s384 = scalar_lea.sflag [#allocation3], 1
    %385 = vsyncpa %s384, 1
    %386 = vsyncpa [#allocation6], 1
    %387 = vsyncpa [#allocation4], 1
    %s388 = scalar_lea.sflag [#allocation4], 1
    %389 = vsyncpa %s388, 1

</llo_original>
